<compile_context>
chip_gen: v6e
topology: v6e:2x2x1
jax: 0.10.0
libtpu: 0.0.40
codegen_flags: <defaults>
</compile_context>

<pallas_src>
import math
from functools import partial

import jax
import jax.numpy as jnp
from jax.experimental import pallas as pl
from jax.experimental.pallas import tpu as pltpu

EPS = 1e-5
_VMEM_LIMIT = 32 << 20        # safe on v5e (raises 16 MiB default) / v6e / v7x
_RESIDENT_BUDGET = 24 << 20   # whole-problem-in-VMEM threshold (incl. double buffers)
_MAX_SELECT_P = 8             # expand (P, GF) BN pattern in-kernel up to this period


def _round_up(n, m):
    return -(-n // m) * m


# ----------------------------------------------------------------------------
# Resident (single HBM pass) kernel: in-kernel BN stats -> affine -> MLP -> +res
# ----------------------------------------------------------------------------
def _resident_kernel(x_ref, sel_ref, selT_ref, grp_ref, gam_ref, bet_ref,
                     w1_ref, b1_ref, w2_ref, b2_ref, o_ref):
    x = x_ref[...].astype(jnp.float32)                           # (Rp, GF)
    sel = sel_ref[...]                                           # (Pp, Rp) phase one-hot
    s1 = jnp.dot(sel, x, preferred_element_type=jnp.float32)     # per-phase row sums
    s2 = jnp.dot(sel, x * x, preferred_element_type=jnp.float32)
    grp = grp_ref[...]                                           # (GF, GF) group mask / (B*F)
    m1 = jnp.dot(s1, grp, preferred_element_type=jnp.float32)    # per-lane mean
    m2 = jnp.dot(s2, grp, preferred_element_type=jnp.float32)    # per-lane E[x^2]
    var = jnp.maximum(m2 - m1 * m1, 0.0)                         # clamp one-pass variance
    a = gam_ref[...] * jax.lax.rsqrt(var + EPS)                  # (Pp, GF)
    c = bet_ref[...] - m1 * a
    a_rows = jnp.dot(selT_ref[...], a, preferred_element_type=jnp.float32)  # (Rp, GF)
    c_rows = jnp.dot(selT_ref[...], c, preferred_element_type=jnp.float32)
    xn = x * a_rows + c_rows                                     # folded BatchNorm
    h = jnp.maximum(jnp.dot(xn, w1_ref[...], preferred_element_type=jnp.float32)
                    + b1_ref[...], 0.0)                          # Linear + ReLU
    y = jnp.dot(h, w2_ref[...], preferred_element_type=jnp.float32) + b2_ref[...]
    o_ref[...] = (y + x).astype(o_ref.dtype)                     # fused residual


def _mixer_resident(x2, gam_pat, bet_pat, w1k, b1r, w2k, b2r, B, F, P, out_dtype):
    R, GF = x2.shape
    Rp = _round_up(max(R, 8), 8)       # pad rows / phases to sublane multiples so
    Pp = _round_up(max(P, 8), 8)       # every matmul operand has an aligned shape
    if Rp != R:
        x2 = jnp.pad(x2, ((0, Rp - R), (0, 0)))

    rows = jnp.arange(Rp)
    phases = jnp.arange(Pp)
    sel = ((rows[None, :] % P) == phases[:, None]) \
        & (rows[None, :] < R) & (phases[:, None] < P)
    sel = sel.astype(jnp.float32)                                  # (Pp, Rp)
    selT = sel.T                                                   # (Rp, Pp)
    lane = jnp.arange(GF)
    grp = ((lane[:, None] // F) == (lane[None, :] // F)).astype(jnp.float32) / float(B * F)

    gamp = jnp.pad(gam_pat, ((0, Pp - P), (0, 0)))                 # pad phases -> a = 0
    betp = jnp.pad(bet_pat, ((0, Pp - P), (0, 0)))

    args = (x2, sel, selT, grp, gamp, betp, w1k, b1r, w2k, b2r)
    out = pl.pallas_call(
        _resident_kernel,
        out_shape=jax.ShapeDtypeStruct((Rp, GF), out_dtype),
        grid=(1,),
        in_specs=[pl.BlockSpec(a.shape, lambda i: (0, 0)) for a in args],
        out_specs=pl.BlockSpec((Rp, GF), lambda i: (0, 0)),
        compiler_params=pltpu.CompilerParams(
            dimension_semantics=("arbitrary",),
            vmem_limit_bytes=_VMEM_LIMIT),
    )(*args)
    return out if Rp == R else out[:R]


# ----------------------------------------------------------------------------
# Tiled path: wrapper-folded BN affine, row-tiled pipelined kernel
# ----------------------------------------------------------------------------
def _tiled_kernel(x_ref, ph_ref, a_ref, c_ref, w1_ref, b1_ref, w2_ref, b2_ref, o_ref):
    """One (TM, GF) row tile: folded BN affine -> Linear -> ReLU -> Linear -> +res."""
    x = x_ref[...].astype(jnp.float32)
    tm, gf = x.shape
    a_pat, c_pat = a_ref[...], c_ref[...]
    if a_pat.shape[0] == tm:
        # Pattern already expanded in the wrapper (large-period fallback).
        a_rows, c_rows = a_pat, c_pat
    else:
        # Expand the period-P per-lane BN pattern in-kernel (VPU selects), so the
        # constant VMEM footprint does not scale with the row tile.
        ph = ph_ref[...]                                        # (tm, 1) int32 phase
        a_rows = jnp.broadcast_to(a_pat[0:1, :], (tm, gf))
        c_rows = jnp.broadcast_to(c_pat[0:1, :], (tm, gf))
        for k in range(1, a_pat.shape[0]):
            m = ph == k
            a_rows = jnp.where(m, a_pat[k:k + 1, :], a_rows)
            c_rows = jnp.where(m, c_pat[k:k + 1, :], c_rows)
    xn = x * a_rows + c_rows                                    # folded BatchNorm
    h = jnp.maximum(jnp.dot(xn, w1_ref[...], preferred_element_type=jnp.float32)
                    + b1_ref[...], 0.0)
    y = jnp.dot(h, w2_ref[...], preferred_element_type=jnp.float32) + b2_ref[...]
    o_ref[...] = (y + x).astype(o_ref.dtype)


def _choose_row_tile(R, P, GF, max_block_bytes):
    """Largest row tile that is a multiple of lcm(P, 8), stays under
    max_block_bytes, and keeps >= 2 grid steps when the array is big enough.
    Prefers an exact divisor of R (no padding copy)."""
    L = P * 8 // math.gcd(P, 8)
    cap = max(L, (max_block_bytes // (4 * GF)) // L * L)
    if R >= 2 * L:
        cap = min(cap, max(L, (R // 2) // L * L))   # >= 2 tiles (v7x megacore / pipeline)
    t = cap
    while t >= L:
        if R % t == 0:
            return t
        t -= L
    return cap                                      # caller zero-pads R


def _mixer_tiled(x2, a_pat, c_pat, w1k, b1r, w2k, b2r, P, out_dtype):
    R, GF = x2.shape
    max_block = (4 << 20) if P <= _MAX_SELECT_P else (2 << 20)
    tm = _choose_row_tile(R, P, GF, max_block)
    Rp = _round_up(R, tm)
    if Rp != R:
        # Pad rows flow through the MLP and are sliced off below; BN stats were
        # computed on the real data in the wrapper, so padding does not bias them.
        x2 = jnp.pad(x2, ((0, Rp - R), (0, 0)))

    if P <= _MAX_SELECT_P:
        a_in, c_in = a_pat, c_pat                                 # (P, GF) tiny consts
    else:
        a_in = jnp.tile(a_pat, (tm // P, 1))                      # (tm, GF) fallback
        c_in = jnp.tile(c_pat, (tm // P, 1))
    phase = (jnp.arange(tm, dtype=jnp.int32) % P).reshape(tm, 1)  # per-tile row phase

    row_spec = pl.BlockSpec((tm, GF), lambda i: (i, 0))
    const = lambda shape: pl.BlockSpec(shape, lambda i: (0, 0))

    out = pl.pallas_call(
        _tiled_kernel,
        out_shape=jax.ShapeDtypeStruct((Rp, GF), out_dtype),
        grid=(Rp // tm,),
        in_specs=[
            row_spec,                 # x tile (pipelined, double-buffered)
            const((tm, 1)),           # row phase
            const(a_in.shape),        # BN scale pattern
            const(c_in.shape),        # BN shift pattern
            const((GF, GF)),          # W1^T (block-diagonal)
            const((1, GF)),           # b1
            const((GF, GF)),          # W2^T (block-diagonal)
            const((1, GF)),           # b2
        ],
        out_specs=row_spec,
        compiler_params=pltpu.CompilerParams(
            dimension_semantics=("parallel",),     # rows independent -> megacore
            vmem_limit_bytes=_VMEM_LIMIT),
    )(x2, phase, a_in, c_in, w1k, b1r, w2k, b2r)
    return out if Rp == R else out[:R]


# ----------------------------------------------------------------------------
# Public wrapper
# ----------------------------------------------------------------------------
@partial(jax.jit, static_argnames=("force_tiled",))
def mixer_layer(x, gamma, beta, w1, b1, w2, b2, *, force_tiled=False):
    """Forward of Mixer_Layer.  x: (B, T, F).  w1/w2 are PyTorch (out, in) weights."""
    B, T, F = x.shape

    # ---- lane packing: G consecutive time steps per 128-wide packed row ----
    if F < 128 and 128 % F == 0 and T % (128 // F) == 0:
        G = 128 // F
    else:
        G = 1
        # TODO(synk): for F not a multiple of 128 the lane dim could be zero-padded
        # to 128 to keep stores lane-dense; left as-is (sub-128-lane partial stores).
    GF = G * F
    P = T // G                       # per-row time-channel pattern period
    R = (B * T) // G                 # packed rows; row r = b*P + p, lane l = g*F + f
    x2 = x.reshape(R, GF)            # free row-major view; original dtype kept

    # ---- fold Linear weights (block-diagonal when lane-packed) ----
    w1t = w1.T.astype(jnp.float32)
    w2t = w2.T.astype(jnp.float32)
    if G > 1:
        eye_g = jnp.eye(G, dtype=jnp.float32)
        w1k = jnp.kron(eye_g, w1t)                      # (GF, GF)
        w2k = jnp.kron(eye_g, w2t)
    else:
        w1k, w2k = w1t, w2t
    b1r = jnp.tile(b1.astype(jnp.float32), G).reshape(1, GF)
    b2r = jnp.tile(b2.astype(jnp.float32), G).reshape(1, GF)
    gam_pat = jnp.repeat(gamma.astype(jnp.float32).reshape(P, G), F, axis=1)  # (P, GF)
    bet_pat = jnp.repeat(beta.astype(jnp.float32).reshape(P, G), F, axis=1)

    # ---- single-HBM-pass resident kernel whenever everything fits in VMEM ----
    Rp = _round_up(max(R, 8), 8)
    Pp = _round_up(max(P, 8), 8)
    est = (4 * Rp * GF * 4                 # x + out blocks (double-buffered)
           + 2 * (3 * GF * GF * 4)         # W1, W2, group mask
           + 2 * (2 * Pp * Rp * 4)         # phase selectors
           + 2 * (4 * Pp * GF * 4))        # gamma/beta patterns + slack
    if not force_tiled and est <= _RESIDENT_BUDGET:
        out = _mixer_resident(x2, gam_pat, bet_pat, w1k, b1r, w2k, b2r,
                              B, F, P, x.dtype)
        return out.reshape(B, T, F)

    # ---- tiled path: one fused wrapper reduction for BN stats, then row tiles ----
    # TODO(synk): BatchNorm running-stat updates (training-side state) are not
    # reproduced; the forward output does not depend on them.
    xf = x.astype(jnp.float32)
    mean = jnp.mean(xf, axis=(0, 2))                    # (T,)  } both reductions share
    msq = jnp.mean(xf * xf, axis=(0, 2))                # (T,)  } one fused read of x
    var = jnp.maximum(msq - mean * mean, 0.0)           # clamp one-pass variance
    a = gamma.astype(jnp.float32) * jax.lax.rsqrt(var + EPS)
    c = beta.astype(jnp.float32) - mean * a
    a_pat = jnp.repeat(a.reshape(P, G), F, axis=1)      # (P, GF) per-lane pattern
    c_pat = jnp.repeat(c.reshape(P, G), F, axis=1)
    out = _mixer_tiled(x2, a_pat, c_pat, w1k, b1r, w2k, b2r, P, x.dtype)
    return out.reshape(B, T, F)


# ----------------------------------------------------------------------------
# Pure-JAX reference and test harness
# ----------------------------------------------------------------------------
def mixer_layer_ref(x, gamma, beta, w1, b1, w2, b2):
    """Pure-JAX reference mirroring the PyTorch training-mode forward."""
    xf = x.astype(jnp.float32)
    mean = jnp.mean(xf, axis=(0, 2), keepdims=True)
    var = jnp.mean((xf - mean) ** 2, axis=(0, 2), keepdims=True)
    xn = (xf - mean) / jnp.sqrt(var + EPS)
    xn = xn * gamma[None, :, None] + beta[None, :, None]
    h = jnp.maximum(jnp.einsum("btf,gf->btg", xn, w1) + b1, 0.0)
    y = jnp.einsum("bth,gh->btg", h, w2) + b2
    return (y + xf).astype(x.dtype)


def _make_params(key, T, F):
    kw1, kb1, kw2, kb2, kg, kb = jax.random.split(key, 6)
    bound = 1.0 / jnp.sqrt(jnp.float32(F))
    w1 = jax.random.uniform(kw1, (F, F), jnp.float32, -bound, bound)
    b1 = jax.random.uniform(kb1, (F,), jnp.float32, -bound, bound)
    w2 = jax.random.uniform(kw2, (F, F), jnp.float32, -bound, bound)
    b2 = jax.random.uniform(kb2, (F,), jnp.float32, -bound, bound)
    gamma = 1.0 + 0.1 * jax.random.normal(kg, (T,), jnp.float32)
    beta = 0.1 * jax.random.normal(kb, (T,), jnp.float32)
    return gamma, beta, w1, b1, w2, b2


if __name__ == "__main__":
    key = jax.random.PRNGKey(0)

    def run_case(k, B, T, F, force_tiled=False, tag=""):
        k0, k1 = jax.random.split(k)
        x = jax.random.normal(k0, (B, T, F), dtype=jnp.float32)
        params = _make_params(k1, T, F)
        out = jax.block_until_ready(mixer_layer(x, *params, force_tiled=force_tiled))
        ref = mixer_layer_ref(x, *params)
        assert out.shape == (B, T, F)
        err = float(jnp.max(jnp.abs(out - ref)))
        assert jnp.allclose(out, ref, atol=1e-4, rtol=1e-4), (tag, err)

    k1, k2, k3, key = jax.random.split(key, 4)
    # Primary config: lane-packed path (G=4), single-pass resident kernel.
    run_case(k1, 2, 8, 32, tag="resident-G4")
    # Already-lane-dense path (G=1, F=256), resident kernel.
    run_case(k2, 2, 8, 256, tag="resident-G1")
    # Row-tiled pipelined kernel (grid=2) with in-kernel BN-pattern expansion.
    run_case(k3, 16, 8, 32, force_tiled=True, tag="tiled-G4")

    print("KERNEL_OK")
</pallas_src>

<mosaic_0001>
module attributes {stable_mosaic.version = 11 : i64} {
  func.func @_resident_kernel(%arg0: i32, %arg1: memref<8x128xf32, #tpu.memory_space<vmem>>, %arg2: memref<8x8xf32, #tpu.memory_space<vmem>>, %arg3: memref<8x8xf32, #tpu.memory_space<vmem>>, %arg4: memref<128x128xf32, #tpu.memory_space<vmem>>, %arg5: memref<8x128xf32, #tpu.memory_space<vmem>>, %arg6: memref<8x128xf32, #tpu.memory_space<vmem>>, %arg7: memref<128x128xf32, #tpu.memory_space<vmem>>, %arg8: memref<1x128xf32, #tpu.memory_space<vmem>>, %arg9: memref<128x128xf32, #tpu.memory_space<vmem>>, %arg10: memref<1x128xf32, #tpu.memory_space<vmem>>, %arg11: memref<8x128xf32, #tpu.memory_space<vmem>>) attributes {dimension_semantics = [#tpu.dimension_semantics<arbitrary>], iteration_bounds = array<i64: 1>, scalar_prefetch = 0 : i64, scratch_operands = 0 : i64, tpu.core_type = #tpu.core_type<tc>, window_params = [{pipeline_mode = #tpu.pipeline_mode<synchronous>, transform_indices = @transform_0, window_bounds = array<i64: 8, 128>}, {pipeline_mode = #tpu.pipeline_mode<synchronous>, transform_indices = @transform_1, window_bounds = array<i64: 8, 8>}, {pipeline_mode = #tpu.pipeline_mode<synchronous>, transform_indices = @transform_2, window_bounds = array<i64: 8, 8>}, {pipeline_mode = #tpu.pipeline_mode<synchronous>, transform_indices = @transform_3, window_bounds = array<i64: 128, 128>}, {pipeline_mode = #tpu.pipeline_mode<synchronous>, transform_indices = @transform_4, window_bounds = array<i64: 8, 128>}, {pipeline_mode = #tpu.pipeline_mode<synchronous>, transform_indices = @transform_5, window_bounds = array<i64: 8, 128>}, {pipeline_mode = #tpu.pipeline_mode<synchronous>, transform_indices = @transform_6, window_bounds = array<i64: 128, 128>}, {pipeline_mode = #tpu.pipeline_mode<synchronous>, transform_indices = @transform_7, window_bounds = array<i64: 1, 128>}, {pipeline_mode = #tpu.pipeline_mode<synchronous>, transform_indices = @transform_8, window_bounds = array<i64: 128, 128>}, {pipeline_mode = #tpu.pipeline_mode<synchronous>, transform_indices = @transform_9, window_bounds = array<i64: 1, 128>}, {pipeline_mode = #tpu.pipeline_mode<synchronous>, transform_indices = @transform_10, window_bounds = array<i64: 8, 128>}]} {
    %c0 = arith.constant 0 : index
    %c0_0 = arith.constant 0 : index
    %0 = vector.load %arg1[%c0, %c0_0] : memref<8x128xf32, #tpu.memory_space<vmem>>, vector<8x128xf32>
    %c0_1 = arith.constant 0 : index
    %c0_2 = arith.constant 0 : index
    %1 = vector.load %arg2[%c0_1, %c0_2] : memref<8x8xf32, #tpu.memory_space<vmem>>, vector<8x8xf32>
    %cst = arith.constant dense<0.000000e+00> : vector<8x128xf32>
    %2 = tpu.matmul %1, %0, %cst {dimension_numbers = #tpu.dot_dimension_numbers<[1], [0], [0], [1], [0, 0, 1, 1], [], []>} : vector<8x8xf32>, vector<8x128xf32>, vector<8x128xf32> -> vector<8x128xf32>
    %3 = arith.mulf %0, %0 : vector<8x128xf32>
    %cst_3 = arith.constant dense<0.000000e+00> : vector<8x128xf32>
    %4 = tpu.matmul %1, %3, %cst_3 {dimension_numbers = #tpu.dot_dimension_numbers<[1], [0], [0], [1], [0, 0, 1, 1], [], []>} : vector<8x8xf32>, vector<8x128xf32>, vector<8x128xf32> -> vector<8x128xf32>
    %c0_4 = arith.constant 0 : index
    %c0_5 = arith.constant 0 : index
    %5 = vector.load %arg4[%c0_4, %c0_5] : memref<128x128xf32, #tpu.memory_space<vmem>>, vector<128x128xf32>
    %cst_6 = arith.constant dense<0.000000e+00> : vector<8x128xf32>
    %6 = tpu.matmul %2, %5, %cst_6 {dimension_numbers = #tpu.dot_dimension_numbers<[1], [0], [0], [1], [0, 0, 1, 1], [], []>} : vector<8x128xf32>, vector<128x128xf32>, vector<8x128xf32> -> vector<8x128xf32>
    %cst_7 = arith.constant dense<0.000000e+00> : vector<8x128xf32>
    %7 = tpu.matmul %4, %5, %cst_7 {dimension_numbers = #tpu.dot_dimension_numbers<[1], [0], [0], [1], [0, 0, 1, 1], [], []>} : vector<8x128xf32>, vector<128x128xf32>, vector<8x128xf32> -> vector<8x128xf32>
    %8 = arith.mulf %6, %6 : vector<8x128xf32>
    %9 = arith.subf %7, %8 : vector<8x128xf32>
    %cst_8 = arith.constant 0.000000e+00 : f32
    %10 = vector.broadcast %cst_8 : f32 to vector<8x128xf32>
    %11 = arith.maximumf %9, %10 : vector<8x128xf32>
    %c0_9 = arith.constant 0 : index
    %c0_10 = arith.constant 0 : index
    %12 = vector.load %arg5[%c0_9, %c0_10] : memref<8x128xf32, #tpu.memory_space<vmem>>, vector<8x128xf32>
    %cst_11 = arith.constant 9.99999974E-6 : f32
    %13 = vector.broadcast %cst_11 : f32 to vector<8x128xf32>
    %14 = arith.addf %11, %13 : vector<8x128xf32>
    %15 = math.rsqrt %14 : vector<8x128xf32>
    %16 = arith.mulf %12, %15 : vector<8x128xf32>
    %c0_12 = arith.constant 0 : index
    %c0_13 = arith.constant 0 : index
    %17 = vector.load %arg6[%c0_12, %c0_13] : memref<8x128xf32, #tpu.memory_space<vmem>>, vector<8x128xf32>
    %18 = arith.mulf %6, %16 : vector<8x128xf32>
    %19 = arith.subf %17, %18 : vector<8x128xf32>
    %c0_14 = arith.constant 0 : index
    %c0_15 = arith.constant 0 : index
    %20 = vector.load %arg3[%c0_14, %c0_15] : memref<8x8xf32, #tpu.memory_space<vmem>>, vector<8x8xf32>
    %cst_16 = arith.constant dense<0.000000e+00> : vector<8x128xf32>
    %21 = tpu.matmul %20, %16, %cst_16 {dimension_numbers = #tpu.dot_dimension_numbers<[1], [0], [0], [1], [0, 0, 1, 1], [], []>} : vector<8x8xf32>, vector<8x128xf32>, vector<8x128xf32> -> vector<8x128xf32>
    %c0_17 = arith.constant 0 : index
    %c0_18 = arith.constant 0 : index
    %22 = vector.load %arg3[%c0_17, %c0_18] : memref<8x8xf32, #tpu.memory_space<vmem>>, vector<8x8xf32>
    %cst_19 = arith.constant dense<0.000000e+00> : vector<8x128xf32>
    %23 = tpu.matmul %22, %19, %cst_19 {dimension_numbers = #tpu.dot_dimension_numbers<[1], [0], [0], [1], [0, 0, 1, 1], [], []>} : vector<8x8xf32>, vector<8x128xf32>, vector<8x128xf32> -> vector<8x128xf32>
    %24 = arith.mulf %0, %21 : vector<8x128xf32>
    %25 = arith.addf %24, %23 : vector<8x128xf32>
    %c0_20 = arith.constant 0 : index
    %c0_21 = arith.constant 0 : index
    %26 = vector.load %arg7[%c0_20, %c0_21] : memref<128x128xf32, #tpu.memory_space<vmem>>, vector<128x128xf32>
    %cst_22 = arith.constant dense<0.000000e+00> : vector<8x128xf32>
    %27 = tpu.matmul %25, %26, %cst_22 {dimension_numbers = #tpu.dot_dimension_numbers<[1], [0], [0], [1], [0, 0, 1, 1], [], []>} : vector<8x128xf32>, vector<128x128xf32>, vector<8x128xf32> -> vector<8x128xf32>
    %c0_23 = arith.constant 0 : index
    %c0_24 = arith.constant 0 : index
    %28 = vector.load %arg8[%c0_23, %c0_24] : memref<1x128xf32, #tpu.memory_space<vmem>>, vector<1x128xf32>
    %29 = vector.broadcast %28 : vector<1x128xf32> to vector<8x128xf32>
    %30 = arith.addf %27, %29 : vector<8x128xf32>
    %cst_25 = arith.constant 0.000000e+00 : f32
    %31 = vector.broadcast %cst_25 : f32 to vector<8x128xf32>
    %32 = arith.maximumf %30, %31 : vector<8x128xf32>
    %c0_26 = arith.constant 0 : index
    %c0_27 = arith.constant 0 : index
    %33 = vector.load %arg9[%c0_26, %c0_27] : memref<128x128xf32, #tpu.memory_space<vmem>>, vector<128x128xf32>
    %cst_28 = arith.constant dense<0.000000e+00> : vector<8x128xf32>
    %34 = tpu.matmul %32, %33, %cst_28 {dimension_numbers = #tpu.dot_dimension_numbers<[1], [0], [0], [1], [0, 0, 1, 1], [], []>} : vector<8x128xf32>, vector<128x128xf32>, vector<8x128xf32> -> vector<8x128xf32>
    %c0_29 = arith.constant 0 : index
    %c0_30 = arith.constant 0 : index
    %35 = vector.load %arg10[%c0_29, %c0_30] : memref<1x128xf32, #tpu.memory_space<vmem>>, vector<1x128xf32>
    %36 = vector.broadcast %35 : vector<1x128xf32> to vector<8x128xf32>
    %37 = arith.addf %34, %36 : vector<8x128xf32>
    %38 = arith.addf %37, %0 : vector<8x128xf32>
    %c0_31 = arith.constant 0 : index
    %c0_32 = arith.constant 0 : index
    %39 = vector.load %arg11[%c0_31, %c0_32] : memref<8x128xf32, #tpu.memory_space<vmem>>, vector<8x128xf32>
    tpu.vector_store %arg11[%c0_31, %c0_32], %38 {strides = array<i32>} : memref<8x128xf32, #tpu.memory_space<vmem>>, vector<8x128xf32>,
    return
  }
  func.func @transform_0(%arg0: i32) -> (i32, i32) {
    %c0_i32 = arith.constant 0 : i32
    %c0_i32_0 = arith.constant 0 : i32
    %c0_i32_1 = arith.constant 0 : i32
    return %c0_i32, %c0_i32_0 : i32, i32
  }
  func.func @transform_1(%arg0: i32) -> (i32, i32) {
    %c0_i32 = arith.constant 0 : i32
    %c0_i32_0 = arith.constant 0 : i32
    %c0_i32_1 = arith.constant 0 : i32
    return %c0_i32, %c0_i32_0 : i32, i32
  }
  func.func @transform_2(%arg0: i32) -> (i32, i32) {
    %c0_i32 = arith.constant 0 : i32
    %c0_i32_0 = arith.constant 0 : i32
    %c0_i32_1 = arith.constant 0 : i32
    return %c0_i32, %c0_i32_0 : i32, i32
  }
  func.func @transform_3(%arg0: i32) -> (i32, i32) {
    %c0_i32 = arith.constant 0 : i32
    %c0_i32_0 = arith.constant 0 : i32
    %c0_i32_1 = arith.constant 0 : i32
    return %c0_i32, %c0_i32_0 : i32, i32
  }
  func.func @transform_4(%arg0: i32) -> (i32, i32) {
    %c0_i32 = arith.constant 0 : i32
    %c0_i32_0 = arith.constant 0 : i32
    %c0_i32_1 = arith.constant 0 : i32
    return %c0_i32, %c0_i32_0 : i32, i32
  }
  func.func @transform_5(%arg0: i32) -> (i32, i32) {
    %c0_i32 = arith.constant 0 : i32
    %c0_i32_0 = arith.constant 0 : i32
    %c0_i32_1 = arith.constant 0 : i32
    return %c0_i32, %c0_i32_0 : i32, i32
  }
  func.func @transform_6(%arg0: i32) -> (i32, i32) {
    %c0_i32 = arith.constant 0 : i32
    %c0_i32_0 = arith.constant 0 : i32
    %c0_i32_1 = arith.constant 0 : i32
    return %c0_i32, %c0_i32_0 : i32, i32
  }
  func.func @transform_7(%arg0: i32) -> (i32, i32) {
    %c0_i32 = arith.constant 0 : i32
    %c0_i32_0 = arith.constant 0 : i32
    %c0_i32_1 = arith.constant 0 : i32
    return %c0_i32, %c0_i32_0 : i32, i32
  }
  func.func @transform_8(%arg0: i32) -> (i32, i32) {
    %c0_i32 = arith.constant 0 : i32
    %c0_i32_0 = arith.constant 0 : i32
    %c0_i32_1 = arith.constant 0 : i32
    return %c0_i32, %c0_i32_0 : i32, i32
  }
  func.func @transform_9(%arg0: i32) -> (i32, i32) {
    %c0_i32 = arith.constant 0 : i32
    %c0_i32_0 = arith.constant 0 : i32
    %c0_i32_1 = arith.constant 0 : i32
    return %c0_i32, %c0_i32_0 : i32, i32
  }
  func.func @transform_10(%arg0: i32) -> (i32, i32) {
    %c0_i32 = arith.constant 0 : i32
    %c0_i32_0 = arith.constant 0 : i32
    %c0_i32_1 = arith.constant 0 : i32
    return %c0_i32, %c0_i32_0 : i32, i32
  }
}

</mosaic_0001>

<llo_original>
// kernel: tile.13
$region0: #{tile.13}
  #allocation0 [shape = 's32[1]{0}', space=sflag, size = 0x4, scoped, tag = 'scoped memory for tile.13']
  %s0 = inlined_call_operand.vmem [shape: f32[32], index: 0, kind: input, shape index: {}]
  %s1 = inlined_call_operand.vmem [shape: f32[4,32], index: 1, kind: output, shape index: {}]
  // Predicated region
  $region2: #{tile.13} parent=0 // pred_check
    _
  $region3: #{tile.13} parent=0 // pred_check_branch
    %3 = sbr.rel (0) target = $region5
  $region4: #{tile.13} parent=0 // pred_region
    _
  $region5: #{tile.13} parent=0 // pred_fallthru
    _
  %v4 = vld [vmem:[%s0] ss:$0 sm:$0xff]
  %5 = vst [vmem:[%s1] sm:$0xf] %v4

// kernel: tile.14
$region0: #{tile.14}
  %s0 = inlined_call_operand.vmem [shape: f32[4,32], index: 0, kind: input, shape index: {}]
  %s1 = inlined_call_operand.vmem [shape: f32[1,128], index: 1, kind: output, shape index: {}]
  $region1: #{tile.14} parent=0
    #allocation0 [shape = 'u8[4096]{0}', space=vmem, size = 0x1000, scoped, tag = 'scoped mem for output reshape']
    #allocation1 [shape = 'u8[4096]{0}', space=vmem, size = 0x1000, scoped, tag = 'scoped mem for input reshape']
    %s3 = sshll.u32 1, 4
    %s4 = ssub.s32 %s3, 1
    %v5 = vld [vmem:[%s0] sm:%s4]
    %6 = vst [vmem:[#allocation1] sm:%s4] %v5
    %v7 = vld [vmem:[#allocation1] sm:$0x1]
    %vm8 = vcmask 261120
    %9 = vst.msk [vmem:[#allocation0] sm:$0x1] %vm8, %v7
    %s10 = scalar_lea.vmem [#allocation1], 3
    %v11 = vld [vmem:[%s10] sm:$0x1]
    %12 = vrot.lane.b32.xlu0 %v11, 96
    %v13 = vpop.permute.xlu0 %12
    %vm14 = vcmask 1048320
    %15 = vst.msk [vmem:[#allocation0] sm:$0x1] %vm14, %v13
    %s16 = scalar_lea.vmem [#allocation1], 2
    %v17 = vld [vmem:[%s16] sm:$0x1]
    %18 = vrot.lane.b32.xlu0 %v17, 64
    %v19 = vpop.permute.xlu0 %18
    %vm20 = vcmask 785920
    %21 = vst.msk [vmem:[#allocation0] sm:$0x1] %vm20, %v19
    %s22 = scalar_lea.vmem [#allocation1], 1
    %v23 = vld [vmem:[%s22] sm:$0x1]
    %24 = vrot.lane.b32.xlu0 %v23, 32
    %v25 = vpop.permute.xlu0 %24
    %vm26 = vcmask 523520
    %27 = vst.msk [vmem:[#allocation0] sm:$0x1] %vm26, %v25
    %s29 = sshll.u32 1, 1
    %s30 = ssub.s32 %s29, 1
    %v32 = vld [vmem:[#allocation0] sm:%s30]
    %s33 = sshll.u32 1, 1
    %s34 = ssub.s32 %s33, 1
    %35 = vst [vmem:[%s1] sm:%s34] %v32

// kernel: mixer_layer.1
$region0: #{mixer_layer.1}
  #allocation0 [shape = 'u32[]', space=smem, size = 0x4, offset = 0x4, fixed_abs, tag = 'smem constant byte address 0x4 - core index']
  #allocation1 [shape = 'u32[144,128]{1,0:T(1,128)}', space=vmem, size = 0x12000, scoped, tag = 'internal scratch']
  %s0 = inlined_call_operand.vmem [shape: f32[8,128], index: 0, kind: input, shape index: {}]
  %s1 = inlined_call_operand.vmem [shape: f32[8,8], index: 1, kind: input, shape index: {}]
  %s2 = inlined_call_operand.vmem [shape: f32[8,8], index: 2, kind: input, shape index: {}]
  %s3 = inlined_call_operand.vmem [shape: f32[128,128], index: 3, kind: input, shape index: {}]
  %s4 = inlined_call_operand.vmem [shape: f32[8,128], index: 4, kind: input, shape index: {}]
  %s5 = inlined_call_operand.vmem [shape: f32[8,128], index: 5, kind: input, shape index: {}]
  %s6 = inlined_call_operand.vmem [shape: f32[128,128], index: 6, kind: input, shape index: {}]
  %s7 = inlined_call_operand.vmem [shape: f32[1,128], index: 7, kind: input, shape index: {}]
  %s8 = inlined_call_operand.vmem [shape: f32[128,128], index: 8, kind: input, shape index: {}]
  %s9 = inlined_call_operand.vmem [shape: f32[1,128], index: 9, kind: input, shape index: {}]
  %s10 = inlined_call_operand.vmem [shape: f32[8,128], index: 10, kind: output, shape index: {}]
  %s11 = sld [smem:[#allocation0]]
  $region50: #{mixer_layer.1} parent=0
    _
  %s13 = ssub.s32 1, %s11
  %s14 = scalar_select 0, %s13, %s11
  // Predicated region
  $region2: #{mixer_layer.1} parent=0 // pred_check
    _
  $region3: #{mixer_layer.1} parent=0 // pred_check_branch
    %16 = sbr.rel (0) target = $region5
  $region4: #{mixer_layer.1} parent=0 // pred_region
    _
  $region5: #{mixer_layer.1} parent=0 // pred_fallthru
    _
  // Predicated region
  $region6: #{mixer_layer.1} parent=0 // pred_check
    _
  $region7: #{mixer_layer.1} parent=0 // pred_check_branch
    %18 = sbr.rel (0) target = $region9
  $region8: #{mixer_layer.1} parent=0 // pred_region
    _
  $region9: #{mixer_layer.1} parent=0 // pred_fallthru
    _
  // Predicated region
  $region10: #{mixer_layer.1} parent=0 // pred_check
    _
  $region11: #{mixer_layer.1} parent=0 // pred_check_branch
    %20 = sbr.rel (0) target = $region13
  $region12: #{mixer_layer.1} parent=0 // pred_region
    _
  $region13: #{mixer_layer.1} parent=0 // pred_fallthru
    _
  // Predicated region
  $region14: #{mixer_layer.1} parent=0 // pred_check
    _
  $region15: #{mixer_layer.1} parent=0 // pred_check_branch
    %22 = sbr.rel (0) target = $region17
  $region16: #{mixer_layer.1} parent=0 // pred_region
    _
  $region17: #{mixer_layer.1} parent=0 // pred_fallthru
    _
  // Predicated region
  $region18: #{mixer_layer.1} parent=0 // pred_check
    _
  $region19: #{mixer_layer.1} parent=0 // pred_check_branch
    %24 = sbr.rel (0) target = $region21
  $region20: #{mixer_layer.1} parent=0 // pred_region
    _
  $region21: #{mixer_layer.1} parent=0 // pred_fallthru
    _
  // Predicated region
  $region22: #{mixer_layer.1} parent=0 // pred_check
    _
  $region23: #{mixer_layer.1} parent=0 // pred_check_branch
    %26 = sbr.rel (0) target = $region25
  $region24: #{mixer_layer.1} parent=0 // pred_region
    _
  $region25: #{mixer_layer.1} parent=0 // pred_fallthru
    _
  // Predicated region
  $region26: #{mixer_layer.1} parent=0 // pred_check
    _
  $region27: #{mixer_layer.1} parent=0 // pred_check_branch
    %28 = sbr.rel (0) target = $region29
  $region28: #{mixer_layer.1} parent=0 // pred_region
    _
  $region29: #{mixer_layer.1} parent=0 // pred_fallthru
    _
  // Predicated region
  $region30: #{mixer_layer.1} parent=0 // pred_check
    _
  $region31: #{mixer_layer.1} parent=0 // pred_check_branch
    %30 = sbr.rel (0) target = $region33
  $region32: #{mixer_layer.1} parent=0 // pred_region
    _
  $region33: #{mixer_layer.1} parent=0 // pred_fallthru
    _
  // Predicated region
  $region34: #{mixer_layer.1} parent=0 // pred_check
    _
  $region35: #{mixer_layer.1} parent=0 // pred_check_branch
    %32 = sbr.rel (0) target = $region37
  $region36: #{mixer_layer.1} parent=0 // pred_region
    _
  $region37: #{mixer_layer.1} parent=0 // pred_fallthru
    _
  // Predicated region
  $region38: #{mixer_layer.1} parent=0 // pred_check
    _
  $region39: #{mixer_layer.1} parent=0 // pred_check_branch
    %34 = sbr.rel (0) target = $region41
  $region40: #{mixer_layer.1} parent=0 // pred_region
    _
  $region41: #{mixer_layer.1} parent=0 // pred_fallthru
    _
  %v35 = vld [vmem:[%s0] sm:$0xff]
  %v36 = vld [vmem:[%s1] sm:$0xff]
  %vm37 = vcmask 64512
  %v39 = vsel %vm37, %v36, 0
  %41 = vmatprep.subr.mxu0 0.0
  %42 = vmatpush1.msra.mxu0 0.0
  %43 = vmatprep.subr.mxu0 0.0
  %44 = vmatpush1.msra.mxu0 0.0
  %45 = vmatprep.subr.mxu0 0.0
  %46 = vmatpush1.msra.mxu0 0.0
  %47 = vmatprep.subr.mxu0 0.0
  %48 = vmatpush1.msra.mxu0 0.0
  %49 = vmatprep.subr.mxu0 0.0
  %50 = vmatpush1.msra.mxu0 0.0
  %51 = vmatprep.subr.mxu0 0.0
  %52 = vmatpush1.msra.mxu0 0.0
  %53 = vmatprep.subr.mxu0 0.0
  %54 = vmatpush1.msra.mxu0 0.0
  %55 = vmatprep.subr.mxu0 0.0
  %56 = vmatpush1.msra.mxu0 0.0
  %57 = vmatprep.subr.mxu0 0.0
  %58 = vmatpush1.msra.mxu0 0.0
  %59 = vmatprep.subr.mxu0 0.0
  %60 = vmatpush1.msra.mxu0 0.0
  %61 = vmatprep.subr.mxu0 0.0
  %62 = vmatpush1.msra.mxu0 0.0
  %63 = vmatprep.subr.mxu0 0.0
  %64 = vmatpush1.msra.mxu0 0.0
  %65 = vmatprep.subr.mxu0 0.0
  %66 = vmatpush1.msra.mxu0 0.0
  %67 = vmatprep.subr.mxu0 0.0
  %68 = vmatpush1.msra.mxu0 0.0
  %69 = vmatprep.subr.mxu0 0.0
  %70 = vmatpush1.msra.mxu0 0.0
  %71 = vmatprep.subr.mxu0 0.0
  %72 = vmatpush1.msra.mxu0 %v35
  %73 = vmatprep.subr.mxu0 0.0
  %74 = vmatpush2.msra.mxu0 0.0
  %75 = vmatprep.subr.mxu0 0.0
  %76 = vmatpush2.msra.mxu0 0.0
  %77 = vmatprep.subr.mxu0 0.0
  %78 = vmatpush2.msra.mxu0 0.0
  %79 = vmatprep.subr.mxu0 0.0
  %80 = vmatpush2.msra.mxu0 0.0
  %81 = vmatprep.subr.mxu0 0.0
  %82 = vmatpush2.msra.mxu0 0.0
  %83 = vmatprep.subr.mxu0 0.0
  %84 = vmatpush2.msra.mxu0 0.0
  %85 = vmatprep.subr.mxu0 0.0
  %86 = vmatpush2.msra.mxu0 0.0
  %87 = vmatprep.subr.mxu0 0.0
  %88 = vmatpush2.msra.mxu0 0.0
  %89 = vmatprep.subr.mxu0 0.0
  %90 = vmatpush2.msra.mxu0 0.0
  %91 = vmatprep.subr.mxu0 0.0
  %92 = vmatpush2.msra.mxu0 0.0
  %93 = vmatprep.subr.mxu0 0.0
  %94 = vmatpush2.msra.mxu0 0.0
  %95 = vmatprep.subr.mxu0 0.0
  %96 = vmatpush2.msra.mxu0 0.0
  %97 = vmatprep.subr.mxu0 0.0
  %98 = vmatpush2.msra.mxu0 0.0
  %99 = vmatprep.subr.mxu0 0.0
  %100 = vmatpush2.msra.mxu0 0.0
  %101 = vmatprep.subr.mxu0 0.0
  %102 = vmatpush2.msra.mxu0 0.0
  %103 = vmatprep.subr.mxu0 0.0
  %104 = vmatpush2.msra.mxu0 0.0
  %105 = vmatprep.mubr.f32.mxu0 0.0
  %106 = vmatmul.mubr.f32.gmra.mxu0 %v39
  %v107 = vpop.f32.mrf.mxu0
  %v108 = vadd.f32 0.0, %v107
  %v109 = vpop.f32.mrf.mxu0
  %110 = vdwg.mxu0
  %v111 = vmul.f32 %v35, %v35
  %112 = vmatprep.subr.mxu0 0.0
  %113 = vmatpush1.msra.mxu0 0.0
  %114 = vmatprep.subr.mxu0 0.0
  %115 = vmatpush1.msra.mxu0 0.0
  %116 = vmatprep.subr.mxu0 0.0
  %117 = vmatpush1.msra.mxu0 0.0
  %118 = vmatprep.subr.mxu0 0.0
  %119 = vmatpush1.msra.mxu0 0.0
  %120 = vmatprep.subr.mxu0 0.0
  %121 = vmatpush1.msra.mxu0 0.0
  %122 = vmatprep.subr.mxu0 0.0
  %123 = vmatpush1.msra.mxu0 0.0
  %124 = vmatprep.subr.mxu0 0.0
  %125 = vmatpush1.msra.mxu0 0.0
  %126 = vmatprep.subr.mxu0 0.0
  %127 = vmatpush1.msra.mxu0 0.0
  %128 = vmatprep.subr.mxu0 0.0
  %129 = vmatpush1.msra.mxu0 0.0
  %130 = vmatprep.subr.mxu0 0.0
  %131 = vmatpush1.msra.mxu0 0.0
  %132 = vmatprep.subr.mxu0 0.0
  %133 = vmatpush1.msra.mxu0 0.0
  %134 = vmatprep.subr.mxu0 0.0
  %135 = vmatpush1.msra.mxu0 0.0
  %136 = vmatprep.subr.mxu0 0.0
  %137 = vmatpush1.msra.mxu0 0.0
  %138 = vmatprep.subr.mxu0 0.0
  %139 = vmatpush1.msra.mxu0 0.0
  %140 = vmatprep.subr.mxu0 0.0
  %141 = vmatpush1.msra.mxu0 0.0
  %142 = vmatprep.subr.mxu0 0.0
  %143 = vmatpush1.msra.mxu0 %v111
  %144 = vmatprep.subr.mxu0 0.0
  %145 = vmatpush2.msra.mxu0 0.0
  %146 = vmatprep.subr.mxu0 0.0
  %147 = vmatpush2.msra.mxu0 0.0
  %148 = vmatprep.subr.mxu0 0.0
  %149 = vmatpush2.msra.mxu0 0.0
  %150 = vmatprep.subr.mxu0 0.0
  %151 = vmatpush2.msra.mxu0 0.0
  %152 = vmatprep.subr.mxu0 0.0
  %153 = vmatpush2.msra.mxu0 0.0
  %154 = vmatprep.subr.mxu0 0.0
  %155 = vmatpush2.msra.mxu0 0.0
  %156 = vmatprep.subr.mxu0 0.0
  %157 = vmatpush2.msra.mxu0 0.0
  %158 = vmatprep.subr.mxu0 0.0
  %159 = vmatpush2.msra.mxu0 0.0
  %160 = vmatprep.subr.mxu0 0.0
  %161 = vmatpush2.msra.mxu0 0.0
  %162 = vmatprep.subr.mxu0 0.0
  %163 = vmatpush2.msra.mxu0 0.0
  %164 = vmatprep.subr.mxu0 0.0
  %165 = vmatpush2.msra.mxu0 0.0
  %166 = vmatprep.subr.mxu0 0.0
  %167 = vmatpush2.msra.mxu0 0.0
  %168 = vmatprep.subr.mxu0 0.0
  %169 = vmatpush2.msra.mxu0 0.0
  %170 = vmatprep.subr.mxu0 0.0
  %171 = vmatpush2.msra.mxu0 0.0
  %172 = vmatprep.subr.mxu0 0.0
  %173 = vmatpush2.msra.mxu0 0.0
  %174 = vmatprep.subr.mxu0 0.0
  %175 = vmatpush2.msra.mxu0 0.0
  %176 = vmatprep.mubr.f32.mxu0 0.0
  %177 = vmatmul.mubr.f32.gmra.mxu0 %v39
  %v178 = vpop.f32.mrf.mxu0
  %v179 = vadd.f32 0.0, %v178
  %v180 = vpop.f32.mrf.mxu0
  %181 = vdwg.mxu0
  %v182 = vld [vmem:[%s3] sm:$0xff]
  %v183 = vld [vmem:[%s3 + $0x8] sm:$0xff]
  %v184 = vld [vmem:[%s3 + $0x10] sm:$0xff]
  %v185 = vld [vmem:[%s3 + $0x18] sm:$0xff]
  %v186 = vld [vmem:[%s3 + $0x20] sm:$0xff]
  %v187 = vld [vmem:[%s3 + $0x28] sm:$0xff]
  %v188 = vld [vmem:[%s3 + $0x30] sm:$0xff]
  %v189 = vld [vmem:[%s3 + $0x38] sm:$0xff]
  %v190 = vld [vmem:[%s3 + $0x40] sm:$0xff]
  %v191 = vld [vmem:[%s3 + $0x48] sm:$0xff]
  %v192 = vld [vmem:[%s3 + $0x50] sm:$0xff]
  %v193 = vld [vmem:[%s3 + $0x58] sm:$0xff]
  %v194 = vld [vmem:[%s3 + $0x60] sm:$0xff]
  %v195 = vld [vmem:[%s3 + $0x68] sm:$0xff]
  %v196 = vld [vmem:[%s3 + $0x70] sm:$0xff]
  %v197 = vld [vmem:[%s3 + $0x78] sm:$0xff]
  %198 = vmatprep.subr.mxu0 0.0
  %199 = vmatpush1.msra.mxu0 %v197
  %200 = vmatprep.subr.mxu0 0.0
  %201 = vmatpush1.msra.mxu0 %v196
  %202 = vmatprep.subr.mxu0 0.0
  %203 = vmatpush1.msra.mxu0 %v195
  %204 = vmatprep.subr.mxu0 0.0
  %205 = vmatpush1.msra.mxu0 %v194
  %206 = vmatprep.subr.mxu0 0.0
  %207 = vmatpush1.msra.mxu0 %v193
  %208 = vmatprep.subr.mxu0 0.0
  %209 = vmatpush1.msra.mxu0 %v192
  %210 = vmatprep.subr.mxu0 0.0
  %211 = vmatpush1.msra.mxu0 %v191
  %212 = vmatprep.subr.mxu0 0.0
  %213 = vmatpush1.msra.mxu0 %v190
  %214 = vmatprep.subr.mxu0 0.0
  %215 = vmatpush1.msra.mxu0 %v189
  %216 = vmatprep.subr.mxu0 0.0
  %217 = vmatpush1.msra.mxu0 %v188
  %218 = vmatprep.subr.mxu0 0.0
  %219 = vmatpush1.msra.mxu0 %v187
  %220 = vmatprep.subr.mxu0 0.0
  %221 = vmatpush1.msra.mxu0 %v186
  %222 = vmatprep.subr.mxu0 0.0
  %223 = vmatpush1.msra.mxu0 %v185
  %224 = vmatprep.subr.mxu0 0.0
  %225 = vmatpush1.msra.mxu0 %v184
  %226 = vmatprep.subr.mxu0 0.0
  %227 = vmatpush1.msra.mxu0 %v183
  %228 = vmatprep.subr.mxu0 0.0
  %229 = vmatpush1.msra.mxu0 %v182
  %230 = vmatprep.subr.mxu0 0.0
  %231 = vmatpush2.msra.mxu0 0.0
  %232 = vmatprep.subr.mxu0 0.0
  %233 = vmatpush2.msra.mxu0 0.0
  %234 = vmatprep.subr.mxu0 0.0
  %235 = vmatpush2.msra.mxu0 0.0
  %236 = vmatprep.subr.mxu0 0.0
  %237 = vmatpush2.msra.mxu0 0.0
  %238 = vmatprep.subr.mxu0 0.0
  %239 = vmatpush2.msra.mxu0 0.0
  %240 = vmatprep.subr.mxu0 0.0
  %241 = vmatpush2.msra.mxu0 0.0
  %242 = vmatprep.subr.mxu0 0.0
  %243 = vmatpush2.msra.mxu0 0.0
  %244 = vmatprep.subr.mxu0 0.0
  %245 = vmatpush2.msra.mxu0 0.0
  %246 = vmatprep.subr.mxu0 0.0
  %247 = vmatpush2.msra.mxu0 0.0
  %248 = vmatprep.subr.mxu0 0.0
  %249 = vmatpush2.msra.mxu0 0.0
  %250 = vmatprep.subr.mxu0 0.0
  %251 = vmatpush2.msra.mxu0 0.0
  %252 = vmatprep.subr.mxu0 0.0
  %253 = vmatpush2.msra.mxu0 0.0
  %254 = vmatprep.subr.mxu0 0.0
  %255 = vmatpush2.msra.mxu0 0.0
  %256 = vmatprep.subr.mxu0 0.0
  %257 = vmatpush2.msra.mxu0 0.0
  %258 = vmatprep.subr.mxu0 0.0
  %259 = vmatpush2.msra.mxu0 0.0
  %260 = vmatprep.subr.mxu0 0.0
  %261 = vmatpush2.msra.mxu0 0.0
  %262 = vmatprep.mubr.f32.mxu0 0.0
  %263 = vmatmul.mubr.f32.gmra.mxu0 %v108
  %v264 = vpop.f32.mrf.mxu0
  %v265 = vadd.f32 0.0, %v264
  %v266 = vpop.f32.mrf.mxu0
  %267 = vdwg.mxu0
  %268 = vmatprep.subr.mxu0 0.0
  %269 = vmatpush1.msra.mxu0 %v197
  %270 = vmatprep.subr.mxu0 0.0
  %271 = vmatpush1.msra.mxu0 %v196
  %272 = vmatprep.subr.mxu0 0.0
  %273 = vmatpush1.msra.mxu0 %v195
  %274 = vmatprep.subr.mxu0 0.0
  %275 = vmatpush1.msra.mxu0 %v194
  %276 = vmatprep.subr.mxu0 0.0
  %277 = vmatpush1.msra.mxu0 %v193
  %278 = vmatprep.subr.mxu0 0.0
  %279 = vmatpush1.msra.mxu0 %v192
  %280 = vmatprep.subr.mxu0 0.0
  %281 = vmatpush1.msra.mxu0 %v191
  %282 = vmatprep.subr.mxu0 0.0
  %283 = vmatpush1.msra.mxu0 %v190
  %284 = vmatprep.subr.mxu0 0.0
  %285 = vmatpush1.msra.mxu0 %v189
  %286 = vmatprep.subr.mxu0 0.0
  %287 = vmatpush1.msra.mxu0 %v188
  %288 = vmatprep.subr.mxu0 0.0
  %289 = vmatpush1.msra.mxu0 %v187
  %290 = vmatprep.subr.mxu0 0.0
  %291 = vmatpush1.msra.mxu0 %v186
  %292 = vmatprep.subr.mxu0 0.0
  %293 = vmatpush1.msra.mxu0 %v185
  %294 = vmatprep.subr.mxu0 0.0
  %295 = vmatpush1.msra.mxu0 %v184
  %296 = vmatprep.subr.mxu0 0.0
  %297 = vmatpush1.msra.mxu0 %v183
  %298 = vmatprep.subr.mxu0 0.0
  %299 = vmatpush1.msra.mxu0 %v182
  %300 = vmatprep.subr.mxu0 0.0
  %301 = vmatpush2.msra.mxu0 0.0
  %302 = vmatprep.subr.mxu0 0.0
  %303 = vmatpush2.msra.mxu0 0.0
  %304 = vmatprep.subr.mxu0 0.0
  %305 = vmatpush2.msra.mxu0 0.0
  %306 = vmatprep.subr.mxu0 0.0
  %307 = vmatpush2.msra.mxu0 0.0
  %308 = vmatprep.subr.mxu0 0.0
  %309 = vmatpush2.msra.mxu0 0.0
  %310 = vmatprep.subr.mxu0 0.0
  %311 = vmatpush2.msra.mxu0 0.0
  %312 = vmatprep.subr.mxu0 0.0
  %313 = vmatpush2.msra.mxu0 0.0
  %314 = vmatprep.subr.mxu0 0.0
  %315 = vmatpush2.msra.mxu0 0.0
  %316 = vmatprep.subr.mxu0 0.0
  %317 = vmatpush2.msra.mxu0 0.0
  %318 = vmatprep.subr.mxu0 0.0
  %319 = vmatpush2.msra.mxu0 0.0
  %320 = vmatprep.subr.mxu0 0.0
  %321 = vmatpush2.msra.mxu0 0.0
  %322 = vmatprep.subr.mxu0 0.0
  %323 = vmatpush2.msra.mxu0 0.0
  %324 = vmatprep.subr.mxu0 0.0
  %325 = vmatpush2.msra.mxu0 0.0
  %326 = vmatprep.subr.mxu0 0.0
  %327 = vmatpush2.msra.mxu0 0.0
  %328 = vmatprep.subr.mxu0 0.0
  %329 = vmatpush2.msra.mxu0 0.0
  %330 = vmatprep.subr.mxu0 0.0
  %331 = vmatpush2.msra.mxu0 0.0
  %332 = vmatprep.mubr.f32.mxu0 0.0
  %333 = vmatmul.mubr.f32.gmra.mxu0 %v179
  %v334 = vpop.f32.mrf.mxu0
  %v335 = vadd.f32 0.0, %v334
  %v336 = vpop.f32.mrf.mxu0
  %337 = vdwg.mxu0
  %v338 = vmul.f32 %v265, %v265
  %v339 = vsub.f32 %v335, %v338
  %v340 = vmax.f32 %v339, 0.0
  %v341 = vld [vmem:[%s4] sm:$0xff]
  %v342 = vadd.f32 %v340, 1e-05
  %v343 = vrsqrt.pop %v342
  %v344 = vmul.f32 %v341, %v343
  %v345 = vld [vmem:[%s5] sm:$0xff]
  %v346 = vmul.f32 %v265, %v344
  %v347 = vsub.f32 %v345, %v346
  %v348 = vld [vmem:[%s2] sm:$0xff]
  %v350 = vsel %vm37, %v348, 0
  %352 = vmatprep.subr.mxu0 0.0
  %353 = vmatpush1.msra.mxu0 0.0
  %354 = vmatprep.subr.mxu0 0.0
  %355 = vmatpush1.msra.mxu0 0.0
  %356 = vmatprep.subr.mxu0 0.0
  %357 = vmatpush1.msra.mxu0 0.0
  %358 = vmatprep.subr.mxu0 0.0
  %359 = vmatpush1.msra.mxu0 0.0
  %360 = vmatprep.subr.mxu0 0.0
  %361 = vmatpush1.msra.mxu0 0.0
  %362 = vmatprep.subr.mxu0 0.0
  %363 = vmatpush1.msra.mxu0 0.0
  %364 = vmatprep.subr.mxu0 0.0
  %365 = vmatpush1.msra.mxu0 0.0
  %366 = vmatprep.subr.mxu0 0.0
  %367 = vmatpush1.msra.mxu0 0.0
  %368 = vmatprep.subr.mxu0 0.0
  %369 = vmatpush1.msra.mxu0 0.0
  %370 = vmatprep.subr.mxu0 0.0
  %371 = vmatpush1.msra.mxu0 0.0
  %372 = vmatprep.subr.mxu0 0.0
  %373 = vmatpush1.msra.mxu0 0.0
  %374 = vmatprep.subr.mxu0 0.0
  %375 = vmatpush1.msra.mxu0 0.0
  %376 = vmatprep.subr.mxu0 0.0
  %377 = vmatpush1.msra.mxu0 0.0
  %378 = vmatprep.subr.mxu0 0.0
  %379 = vmatpush1.msra.mxu0 0.0
  %380 = vmatprep.subr.mxu0 0.0
  %381 = vmatpush1.msra.mxu0 0.0
  %382 = vmatprep.subr.mxu0 0.0
  %383 = vmatpush1.msra.mxu0 %v344
  %384 = vmatprep.subr.mxu0 0.0
  %385 = vmatpush2.msra.mxu0 0.0
  %386 = vmatprep.subr.mxu0 0.0
  %387 = vmatpush2.msra.mxu0 0.0
  %388 = vmatprep.subr.mxu0 0.0
  %389 = vmatpush2.msra.mxu0 0.0
  %390 = vmatprep.subr.mxu0 0.0
  %391 = vmatpush2.msra.mxu0 0.0
  %392 = vmatprep.subr.mxu0 0.0
  %393 = vmatpush2.msra.mxu0 0.0
  %394 = vmatprep.subr.mxu0 0.0
  %395 = vmatpush2.msra.mxu0 0.0
  %396 = vmatprep.subr.mxu0 0.0
  %397 = vmatpush2.msra.mxu0 0.0
  %398 = vmatprep.subr.mxu0 0.0
  %399 = vmatpush2.msra.mxu0 0.0
  %400 = vmatprep.subr.mxu0 0.0
  %401 = vmatpush2.msra.mxu0 0.0
  %402 = vmatprep.subr.mxu0 0.0
  %403 = vmatpush2.msra.mxu0 0.0
  %404 = vmatprep.subr.mxu0 0.0
  %405 = vmatpush2.msra.mxu0 0.0
  %406 = vmatprep.subr.mxu0 0.0
  %407 = vmatpush2.msra.mxu0 0.0
  %408 = vmatprep.subr.mxu0 0.0
  %409 = vmatpush2.msra.mxu0 0.0
  %410 = vmatprep.subr.mxu0 0.0
  %411 = vmatpush2.msra.mxu0 0.0
  %412 = vmatprep.subr.mxu0 0.0
  %413 = vmatpush2.msra.mxu0 0.0
  %414 = vmatprep.subr.mxu0 0.0
  %415 = vmatpush2.msra.mxu0 0.0
  %416 = vmatprep.mubr.f32.mxu0 0.0
  %417 = vmatmul.mubr.f32.gmra.mxu0 %v350
  %v418 = vpop.f32.mrf.mxu0
  %v419 = vadd.f32 0.0, %v418
  %v420 = vpop.f32.mrf.mxu0
  %421 = vdwg.mxu0
  %422 = vmatprep.subr.mxu0 0.0
  %423 = vmatpush1.msra.mxu0 0.0
  %424 = vmatprep.subr.mxu0 0.0
  %425 = vmatpush1.msra.mxu0 0.0
  %426 = vmatprep.subr.mxu0 0.0
  %427 = vmatpush1.msra.mxu0 0.0
  %428 = vmatprep.subr.mxu0 0.0
  %429 = vmatpush1.msra.mxu0 0.0
  %430 = vmatprep.subr.mxu0 0.0
  %431 = vmatpush1.msra.mxu0 0.0
  %432 = vmatprep.subr.mxu0 0.0
  %433 = vmatpush1.msra.mxu0 0.0
  %434 = vmatprep.subr.mxu0 0.0
  %435 = vmatpush1.msra.mxu0 0.0
  %436 = vmatprep.subr.mxu0 0.0
  %437 = vmatpush1.msra.mxu0 0.0
  %438 = vmatprep.subr.mxu0 0.0
  %439 = vmatpush1.msra.mxu0 0.0
  %440 = vmatprep.subr.mxu0 0.0
  %441 = vmatpush1.msra.mxu0 0.0
  %442 = vmatprep.subr.mxu0 0.0
  %443 = vmatpush1.msra.mxu0 0.0
  %444 = vmatprep.subr.mxu0 0.0
  %445 = vmatpush1.msra.mxu0 0.0
  %446 = vmatprep.subr.mxu0 0.0
  %447 = vmatpush1.msra.mxu0 0.0
  %448 = vmatprep.subr.mxu0 0.0
  %449 = vmatpush1.msra.mxu0 0.0
  %450 = vmatprep.subr.mxu0 0.0
  %451 = vmatpush1.msra.mxu0 0.0
  %452 = vmatprep.subr.mxu0 0.0
  %453 = vmatpush1.msra.mxu0 %v347
  %454 = vmatprep.subr.mxu0 0.0
  %455 = vmatpush2.msra.mxu0 0.0
  %456 = vmatprep.subr.mxu0 0.0
  %457 = vmatpush2.msra.mxu0 0.0
  %458 = vmatprep.subr.mxu0 0.0
  %459 = vmatpush2.msra.mxu0 0.0
  %460 = vmatprep.subr.mxu0 0.0
  %461 = vmatpush2.msra.mxu0 0.0
  %462 = vmatprep.subr.mxu0 0.0
  %463 = vmatpush2.msra.mxu0 0.0
  %464 = vmatprep.subr.mxu0 0.0
  %465 = vmatpush2.msra.mxu0 0.0
  %466 = vmatprep.subr.mxu0 0.0
  %467 = vmatpush2.msra.mxu0 0.0
  %468 = vmatprep.subr.mxu0 0.0
  %469 = vmatpush2.msra.mxu0 0.0
  %470 = vmatprep.subr.mxu0 0.0
  %471 = vmatpush2.msra.mxu0 0.0
  %472 = vmatprep.subr.mxu0 0.0
  %473 = vmatpush2.msra.mxu0 0.0
  %474 = vmatprep.subr.mxu0 0.0
  %475 = vmatpush2.msra.mxu0 0.0
  %476 = vmatprep.subr.mxu0 0.0
  %477 = vmatpush2.msra.mxu0 0.0
  %478 = vmatprep.subr.mxu0 0.0
  %479 = vmatpush2.msra.mxu0 0.0
  %480 = vmatprep.subr.mxu0 0.0
  %481 = vmatpush2.msra.mxu0 0.0
  %482 = vmatprep.subr.mxu0 0.0
  %483 = vmatpush2.msra.mxu0 0.0
  %484 = vmatprep.subr.mxu0 0.0
  %485 = vmatpush2.msra.mxu0 0.0
  %486 = vmatprep.mubr.f32.mxu0 0.0
  %487 = vmatmul.mubr.f32.gmra.mxu0 %v350
  %v488 = vpop.f32.mrf.mxu0
  %v489 = vadd.f32 0.0, %v488
  %v490 = vpop.f32.mrf.mxu0
  %491 = vdwg.mxu0
  %v492 = vmul.f32 %v35, %v419
  %v493 = vadd.f32 %v492, %v489
  %v494 = vld [vmem:[%s6] sm:$0xff]
  %v495 = vld [vmem:[%s6 + $0x8] sm:$0xff]
  %v496 = vld [vmem:[%s6 + $0x10] sm:$0xff]
  %v497 = vld [vmem:[%s6 + $0x18] sm:$0xff]
  %v498 = vld [vmem:[%s6 + $0x20] sm:$0xff]
  %v499 = vld [vmem:[%s6 + $0x28] sm:$0xff]
  %v500 = vld [vmem:[%s6 + $0x30] sm:$0xff]
  %v501 = vld [vmem:[%s6 + $0x38] sm:$0xff]
  %v502 = vld [vmem:[%s6 + $0x40] sm:$0xff]
  %v503 = vld [vmem:[%s6 + $0x48] sm:$0xff]
  %v504 = vld [vmem:[%s6 + $0x50] sm:$0xff]
  %v505 = vld [vmem:[%s6 + $0x58] sm:$0xff]
  %v506 = vld [vmem:[%s6 + $0x60] sm:$0xff]
  %v507 = vld [vmem:[%s6 + $0x68] sm:$0xff]
  %v508 = vld [vmem:[%s6 + $0x70] sm:$0xff]
  %v509 = vld [vmem:[%s6 + $0x78] sm:$0xff]
  %v510 = vld [vmem:[%s7] sm:$0x1]
  %v512 = vlaneseq
  %v513 = vshrl.u32 %v512, 7
  %v514 = vsub.s32 0, %v513
  %v515 = vrot.slane %v510, %v514
  %517 = vmatprep.subr.mxu0 0.0
  %518 = vmatpush1.msra.mxu0 %v509
  %519 = vmatprep.subr.mxu0 0.0
  %520 = vmatpush1.msra.mxu0 %v508
  %521 = vmatprep.subr.mxu0 0.0
  %522 = vmatpush1.msra.mxu0 %v507
  %523 = vmatprep.subr.mxu0 0.0
  %524 = vmatpush1.msra.mxu0 %v506
  %525 = vmatprep.subr.mxu0 0.0
  %526 = vmatpush1.msra.mxu0 %v505
  %527 = vmatprep.subr.mxu0 0.0
  %528 = vmatpush1.msra.mxu0 %v504
  %529 = vmatprep.subr.mxu0 0.0
  %530 = vmatpush1.msra.mxu0 %v503
  %531 = vmatprep.subr.mxu0 0.0
  %532 = vmatpush1.msra.mxu0 %v502
  %533 = vmatprep.subr.mxu0 0.0
  %534 = vmatpush1.msra.mxu0 %v501
  %535 = vmatprep.subr.mxu0 0.0
  %536 = vmatpush1.msra.mxu0 %v500
  %537 = vmatprep.subr.mxu0 0.0
  %538 = vmatpush1.msra.mxu0 %v499
  %539 = vmatprep.subr.mxu0 0.0
  %540 = vmatpush1.msra.mxu0 %v498
  %541 = vmatprep.subr.mxu0 0.0
  %542 = vmatpush1.msra.mxu0 %v497
  %543 = vmatprep.subr.mxu0 0.0
  %544 = vmatpush1.msra.mxu0 %v496
  %545 = vmatprep.subr.mxu0 0.0
  %546 = vmatpush1.msra.mxu0 %v495
  %547 = vmatprep.subr.mxu0 0.0
  %548 = vmatpush1.msra.mxu0 %v494
  %549 = vmatprep.subr.mxu0 0.0
  %550 = vmatpush2.msra.mxu0 0.0
  %551 = vmatprep.subr.mxu0 0.0
  %552 = vmatpush2.msra.mxu0 0.0
  %553 = vmatprep.subr.mxu0 0.0
  %554 = vmatpush2.msra.mxu0 0.0
  %555 = vmatprep.subr.mxu0 0.0
  %556 = vmatpush2.msra.mxu0 0.0
  %557 = vmatprep.subr.mxu0 0.0
  %558 = vmatpush2.msra.mxu0 0.0
  %559 = vmatprep.subr.mxu0 0.0
  %560 = vmatpush2.msra.mxu0 0.0
  %561 = vmatprep.subr.mxu0 0.0
  %562 = vmatpush2.msra.mxu0 0.0
  %563 = vmatprep.subr.mxu0 0.0
  %564 = vmatpush2.msra.mxu0 0.0
  %565 = vmatprep.subr.mxu0 0.0
  %566 = vmatpush2.msra.mxu0 0.0
  %567 = vmatprep.subr.mxu0 0.0
  %568 = vmatpush2.msra.mxu0 0.0
  %569 = vmatprep.subr.mxu0 0.0
  %570 = vmatpush2.msra.mxu0 0.0
  %571 = vmatprep.subr.mxu0 0.0
  %572 = vmatpush2.msra.mxu0 0.0
  %573 = vmatprep.subr.mxu0 0.0
  %574 = vmatpush2.msra.mxu0 0.0
  %575 = vmatprep.subr.mxu0 0.0
  %576 = vmatpush2.msra.mxu0 0.0
  %577 = vmatprep.subr.mxu0 0.0
  %578 = vmatpush2.msra.mxu0 0.0
  %579 = vmatprep.subr.mxu0 0.0
  %580 = vmatpush2.msra.mxu0 0.0
  %581 = vmatprep.mubr.f32.mxu0 0.0
  %582 = vmatmul.mubr.f32.gmra.mxu0 %v493
  %v583 = vpop.f32.mrf.mxu0
  %v584 = vadd.f32 %v515, %v583
  %v585 = vpop.f32.mrf.mxu0
  %586 = vdwg.mxu0
  %v587 = vmax.f32 %v584, 0.0
  %v588 = vld [vmem:[%s8] sm:$0xff]
  %v589 = vld [vmem:[%s8 + $0x8] sm:$0xff]
  %v590 = vld [vmem:[%s8 + $0x10] sm:$0xff]
  %v591 = vld [vmem:[%s8 + $0x18] sm:$0xff]
  %v592 = vld [vmem:[%s8 + $0x20] sm:$0xff]
  %v593 = vld [vmem:[%s8 + $0x28] sm:$0xff]
  %v594 = vld [vmem:[%s8 + $0x30] sm:$0xff]
  %v595 = vld [vmem:[%s8 + $0x38] sm:$0xff]
  %v596 = vld [vmem:[%s8 + $0x40] sm:$0xff]
  %v597 = vld [vmem:[%s8 + $0x48] sm:$0xff]
  %v598 = vld [vmem:[%s8 + $0x50] sm:$0xff]
  %v599 = vld [vmem:[%s8 + $0x58] sm:$0xff]
  %v600 = vld [vmem:[%s8 + $0x60] sm:$0xff]
  %v601 = vld [vmem:[%s8 + $0x68] sm:$0xff]
  %v602 = vld [vmem:[%s8 + $0x70] sm:$0xff]
  %v603 = vld [vmem:[%s8 + $0x78] sm:$0xff]
  %v604 = vld [vmem:[%s9] sm:$0x1]
  %v606 = vlaneseq
  %v607 = vshrl.u32 %v606, 7
  %v608 = vsub.s32 0, %v607
  %v609 = vrot.slane %v604, %v608
  %611 = vmatprep.subr.mxu0 0.0
  %612 = vmatpush1.msra.mxu0 %v603
  %613 = vmatprep.subr.mxu0 0.0
  %614 = vmatpush1.msra.mxu0 %v602
  %615 = vmatprep.subr.mxu0 0.0
  %616 = vmatpush1.msra.mxu0 %v601
  %617 = vmatprep.subr.mxu0 0.0
  %618 = vmatpush1.msra.mxu0 %v600
  %619 = vmatprep.subr.mxu0 0.0
  %620 = vmatpush1.msra.mxu0 %v599
  %621 = vmatprep.subr.mxu0 0.0
  %622 = vmatpush1.msra.mxu0 %v598
  %623 = vmatprep.subr.mxu0 0.0
  %624 = vmatpush1.msra.mxu0 %v597
  %625 = vmatprep.subr.mxu0 0.0
  %626 = vmatpush1.msra.mxu0 %v596
  %627 = vmatprep.subr.mxu0 0.0
  %628 = vmatpush1.msra.mxu0 %v595
  %629 = vmatprep.subr.mxu0 0.0
  %630 = vmatpush1.msra.mxu0 %v594
  %631 = vmatprep.subr.mxu0 0.0
  %632 = vmatpush1.msra.mxu0 %v593
  %633 = vmatprep.subr.mxu0 0.0
  %634 = vmatpush1.msra.mxu0 %v592
  %635 = vmatprep.subr.mxu0 0.0
  %636 = vmatpush1.msra.mxu0 %v591
  %637 = vmatprep.subr.mxu0 0.0
  %638 = vmatpush1.msra.mxu0 %v590
  %639 = vmatprep.subr.mxu0 0.0
  %640 = vmatpush1.msra.mxu0 %v589
  %641 = vmatprep.subr.mxu0 0.0
  %642 = vmatpush1.msra.mxu0 %v588
  %643 = vmatprep.subr.mxu0 0.0
  %644 = vmatpush2.msra.mxu0 0.0
  %645 = vmatprep.subr.mxu0 0.0
  %646 = vmatpush2.msra.mxu0 0.0
  %647 = vmatprep.subr.mxu0 0.0
  %648 = vmatpush2.msra.mxu0 0.0
  %649 = vmatprep.subr.mxu0 0.0
  %650 = vmatpush2.msra.mxu0 0.0
  %651 = vmatprep.subr.mxu0 0.0
  %652 = vmatpush2.msra.mxu0 0.0
  %653 = vmatprep.subr.mxu0 0.0
  %654 = vmatpush2.msra.mxu0 0.0
  %655 = vmatprep.subr.mxu0 0.0
  %656 = vmatpush2.msra.mxu0 0.0
  %657 = vmatprep.subr.mxu0 0.0
  %658 = vmatpush2.msra.mxu0 0.0
  %659 = vmatprep.subr.mxu0 0.0
  %660 = vmatpush2.msra.mxu0 0.0
  %661 = vmatprep.subr.mxu0 0.0
  %662 = vmatpush2.msra.mxu0 0.0
  %663 = vmatprep.subr.mxu0 0.0
  %664 = vmatpush2.msra.mxu0 0.0
  %665 = vmatprep.subr.mxu0 0.0
  %666 = vmatpush2.msra.mxu0 0.0
  %667 = vmatprep.subr.mxu0 0.0
  %668 = vmatpush2.msra.mxu0 0.0
  %669 = vmatprep.subr.mxu0 0.0
  %670 = vmatpush2.msra.mxu0 0.0
  %671 = vmatprep.subr.mxu0 0.0
  %672 = vmatpush2.msra.mxu0 0.0
  %673 = vmatprep.subr.mxu0 0.0
  %674 = vmatpush2.msra.mxu0 0.0
  %675 = vmatprep.mubr.f32.mxu0 0.0
  %676 = vmatmul.mubr.f32.gmra.mxu0 %v587
  %v677 = vpop.f32.mrf.mxu0
  %v678 = vadd.f32 %v609, %v677
  %v679 = vpop.f32.mrf.mxu0
  %680 = vdwg.mxu0
  %v681 = vadd.f32 %v678, %v35
  %682 = vst [vmem:[%s10] sm:$0xff] %v681
  // Predicated region
  $region42: #{mixer_layer.1} parent=0 // pred_check
    _
  $region43: #{mixer_layer.1} parent=0 // pred_check_branch
    %684 = sbr.rel (0) target = $region45
  $region44: #{mixer_layer.1} parent=0 // pred_region
    _
  $region45: #{mixer_layer.1} parent=0 // pred_fallthru
    _
  // Predicated region
  $region46: #{mixer_layer.1} parent=0 // pred_check
    _
  $region47: #{mixer_layer.1} parent=0 // pred_check_branch
    %686 = sbr.rel (0) target = $region49
  $region48: #{mixer_layer.1} parent=0 // pred_region
    _
  $region49: #{mixer_layer.1} parent=0 // pred_fallthru
    _

</llo_original>
